<compile_context>
chip_gen: v7x
topology: tpu7x:2x2x1
jax: 0.10.0
libtpu: 0.0.40
codegen_flags: <defaults>
</compile_context>

<pallas_src>
import jax
import jax.numpy as jnp
from jax.experimental import pallas as pl
from jax.experimental.pallas import tpu as pltpu


# --------------------------- small helpers ----------------------------------


def _cdiv(a, b):
    return (a + b - 1) // b


def _vmem_budgets():
    """Generation-aware (vmem_limit_bytes, per-X-tile budget)."""
    try:
        cap = int(pltpu.get_tpu_info().vmem_capacity_bytes)
    except Exception:
        cap = 64 * 1024 * 1024  # conservative default (v7x per-TC VMEM)
    vmem_limit = min(int(cap * 0.65), 96 * 1024 * 1024)   # 128MiB->~83MiB, 64MiB->~42MiB
    x_budget = min(int(cap * 0.16), 16 * 1024 * 1024)     # 128MiB->16MiB,  64MiB->~10MiB
    return vmem_limit, x_budget


def _choose_tiles(B, S, H, x_itemsize, out_itemsize, vmem_limit, x_budget):
    """Pick (tb, ts, th).  Blocks are legal: each tiled dim is a multiple of
    its sublane/lane requirement or equals the full dimension."""
    # Minimum batch tile: sublane packing of the (tb, th) output / (tb, ts)
    # mask blocks -> 8 for 32-bit, 16 for 16-bit, 32 for 8-bit outputs.
    if out_itemsize >= 4:
        tb_min = 8
    elif out_itemsize == 2:
        tb_min = 16
    else:
        tb_min = 32
    tb_min = B if B <= tb_min else tb_min
    ts_min = S if S <= 128 else 128

    def total_vmem(tb, ts, th):
        x = tb * ts * th * x_itemsize       # double-buffered input
        msk = tb * ts * 4                   # f32 mask, double-buffered
        acc = tb * th * 4                   # f32 accumulator scratch
        out = tb * th * out_itemsize        # output block, double-buffered
        return 2 * x + 2 * msk + acc + 2 * out

    def x_bytes(tb, ts, th):
        return tb * ts * th * x_itemsize

    # --- TH: prefer the FULL last dim (contiguous HBM reads for X), even if
    #         that exceeds the soft per-buffer budget, as long as the total
    #         footprint fits the hard VMEM limit. ---
    if total_vmem(tb_min, ts_min, H) <= vmem_limit:
        th = H
    else:
        th = 128
        while (th * 2 < H
               and x_bytes(tb_min, ts_min, th * 2) <= x_budget
               and total_vmem(tb_min, ts_min, th * 2) <= vmem_limit):
            th *= 2
        th = min(th, H)

    # --- TS: take full S when affordable (drops the reduction grid axis and
    #         the tail mask), otherwise grow in multiples of 128. ---
    if S <= 128 or (x_bytes(tb_min, S, th) <= x_budget
                    and total_vmem(tb_min, S, th) <= vmem_limit):
        ts = S
    else:
        ts = 128
        while (ts * 2 <= S
               and x_bytes(tb_min, ts * 2, th) <= x_budget
               and total_vmem(tb_min, ts * 2, th) <= vmem_limit):
            ts *= 2

    # --- TB: grow the batch tile last (amortizes per-step overhead). ---
    tb = tb_min
    while (tb * 2 <= B
           and x_bytes(tb * 2, ts, th) <= x_budget
           and total_vmem(tb * 2, ts, th) <= vmem_limit):
        tb *= 2

    # --- v7x megacore: try to expose >= 2 parallel (B, H) tiles so both
    #     TensorCores get work.  Split B first (keeps the contiguous full-H
    #     DMA); only split H if B cannot be split further. ---
    while _cdiv(B, tb) * _cdiv(H, th) < 2:
        if tb > tb_min:
            tb = max(tb_min, tb // 2)
        else:
            half = ((th // 2) // 128) * 128
            if 128 <= half < th:
                th = half
            else:
                break

    return tb, ts, th


# ------------------------------ kernels --------------------------------------


def _mask_s_tail(prod_f32, ts, s_total):
    """Zero contributions from out-of-range S positions on the tail block."""
    si = pl.program_id(2)
    s_idx = si * ts + jax.lax.broadcasted_iota(jnp.int32, (1, ts, 1), 1)
    return jnp.where(s_idx < s_total, prod_f32, 0.0)


def _accumulate(prod_f32, o_ref, acc_ref, use_scratch):
    si = pl.program_id(2)

    @pl.when(si == 0)
    def _():
        acc_ref[...] = jnp.zeros_like(acc_ref)

    acc_ref[...] += jnp.sum(prod_f32, axis=1)

    if use_scratch:
        @pl.when(si == pl.num_programs(2) - 1)
        def _():
            o_ref[...] = acc_ref[...].astype(o_ref.dtype)


def _make_kernels(use_scratch, need_s_tail, ts, s_total):
    def masked_kernel(x_ref, m_ref, o_ref, *scratch):
        acc_ref = scratch[0] if use_scratch else o_ref
        x = x_ref[...].astype(jnp.float32)
        m = m_ref[...].astype(jnp.float32)
        prod = x * m[:, :, None]
        if need_s_tail:
            prod = _mask_s_tail(prod, ts, s_total)
        _accumulate(prod, o_ref, acc_ref, use_scratch)

    def sum_kernel(x_ref, o_ref, *scratch):
        acc_ref = scratch[0] if use_scratch else o_ref
        x = x_ref[...].astype(jnp.float32)
        if need_s_tail:
            x = _mask_s_tail(x, ts, s_total)
        _accumulate(x, o_ref, acc_ref, use_scratch)

    return masked_kernel, sum_kernel


# ------------------------------ wrapper --------------------------------------


def masked_sum(X, m=None, *, _tiles=None):
    """X: (B, S, H); m: (B, S) or None. Returns (B, H) = sum_S (X * m[..., None])."""
    B, S, H = X.shape
    out_dtype = X.dtype
    x_itemsize = jnp.dtype(X.dtype).itemsize
    out_itemsize = jnp.dtype(out_dtype).itemsize

    vmem_limit, x_budget = _vmem_budgets()
    if _tiles is not None:
        tb, ts, th = _tiles  # testing hook (tiles must still be block-legal)
    else:
        tb, ts, th = _choose_tiles(B, S, H, x_itemsize, out_itemsize,
                                   vmem_limit, x_budget)

    grid = (_cdiv(B, tb), _cdiv(H, th), _cdiv(S, ts))
    need_s_tail = (S % ts) != 0
    # f32 inputs accumulate directly into the resident output block.
    use_scratch = jnp.dtype(out_dtype) != jnp.dtype(jnp.float32)

    masked_kernel, sum_kernel = _make_kernels(use_scratch, need_s_tail, ts, S)

    x_spec = pl.BlockSpec((tb, ts, th), lambda bi, hi, si: (bi, si, hi))
    o_spec = pl.BlockSpec((tb, th), lambda bi, hi, si: (bi, hi))
    scratch = (pltpu.VMEM((tb, th), jnp.float32),) if use_scratch else ()

    compiler_params = pltpu.CompilerParams(
        dimension_semantics=("parallel", "parallel", "arbitrary"),
        vmem_limit_bytes=vmem_limit,
    )
    out_shape = jax.ShapeDtypeStruct((B, H), out_dtype)

    if m is None:
        cost = pl.CostEstimate(
            flops=B * S * H,
            transcendentals=0,
            bytes_accessed=B * S * H * x_itemsize + B * H * out_itemsize,
        )
        return pl.pallas_call(
            sum_kernel,
            out_shape=out_shape,
            grid_spec=pltpu.PrefetchScalarGridSpec(
                num_scalar_prefetch=0,
                grid=grid,
                in_specs=[x_spec],
                out_specs=o_spec,
                scratch_shapes=scratch,
            ),
            compiler_params=compiler_params,
            cost_estimate=cost,
        )(X)

    # Keep the mask f32 (clean (8,128) tiling, no per-step relayout); never
    # downcast it to X.dtype in the wrapper.
    if m.dtype != jnp.dtype(jnp.float32):
        m = m.astype(jnp.float32)
    m_spec = pl.BlockSpec((tb, ts), lambda bi, hi, si: (bi, si))

    cost = pl.CostEstimate(
        flops=2 * B * S * H,
        transcendentals=0,
        bytes_accessed=B * S * H * x_itemsize + B * S * 4 + B * H * out_itemsize,
    )
    return pl.pallas_call(
        masked_kernel,
        out_shape=out_shape,
        grid_spec=pltpu.PrefetchScalarGridSpec(
            num_scalar_prefetch=0,
            grid=grid,
            in_specs=[x_spec, m_spec],
            out_specs=o_spec,
            scratch_shapes=scratch,
        ),
        compiler_params=compiler_params,
        cost_estimate=cost,
    )(X, m)


# ------------------------------ self-test ------------------------------------

if __name__ == "__main__":
    key = jax.random.PRNGKey(0)
    kx, km, kx2, km2 = jax.random.split(key, 4)

    # 1) small f32 masked case (matches the PyTorch module's typical usage)
    B, S, H = 2, 8, 32
    X = jax.random.normal(kx, (B, S, H), dtype=jnp.float32)
    m = (jax.random.uniform(km, (B, S)) > 0.3).astype(jnp.float32)
    out = jax.block_until_ready(masked_sum(X, m))
    ref = jnp.sum(X * m[:, :, None], axis=1)
    assert out.shape == (B, H)
    assert jnp.allclose(out, ref, atol=1e-5), "mismatch vs reference (masked f32)"

    # 2) no-mask path
    out2 = jax.block_until_ready(masked_sum(X, None))
    assert jnp.allclose(out2, jnp.sum(X, axis=1), atol=1e-5), "mismatch (no mask)"

    # 3) cdiv grid + S tail masking + multi-step accumulation (forced tiles)
    B3, S3, H3 = 8, 200, 128
    X3 = jax.random.normal(kx2, (B3, S3, H3), dtype=jnp.float32)
    m3 = (jax.random.uniform(km2, (B3, S3)) > 0.5).astype(jnp.float32)
    out3 = jax.block_until_ready(masked_sum(X3, m3, _tiles=(8, 128, 128)))
    ref3 = jnp.sum(X3 * m3[:, :, None], axis=1)
    assert jnp.allclose(out3, ref3, atol=1e-3, rtol=1e-4), "mismatch (S tail)"

    # 4) bf16 path (f32 scratch accumulator + downcast on last step)
    Xb = X.astype(jnp.bfloat16)
    outb = jax.block_until_ready(masked_sum(Xb, m))
    refb = jnp.sum(Xb.astype(jnp.float32) * m[:, :, None], axis=1).astype(jnp.bfloat16)
    assert outb.dtype == jnp.bfloat16
    assert jnp.allclose(outb.astype(jnp.float32), refb.astype(jnp.float32),
                        atol=5e-2, rtol=5e-2), "mismatch (bf16)"

    print("KERNEL_OK")
</pallas_src>

<mosaic_0001>
module attributes {stable_mosaic.version = 11 : i64} {
  func.func @masked_kernel(%arg0: i32, %arg1: i32, %arg2: i32, %arg3: memref<2x8x32xf32, #tpu.memory_space<vmem>>, %arg4: memref<2x8xf32, #tpu.memory_space<vmem>>, %arg5: memref<2x32xf32, #tpu.memory_space<vmem>>) attributes {dimension_semantics = [#tpu.dimension_semantics<parallel>, #tpu.dimension_semantics<parallel>, #tpu.dimension_semantics<arbitrary>], iteration_bounds = array<i64: 1, 1, 1>, scalar_prefetch = 0 : i64, scratch_operands = 0 : i64, tpu.core_type = #tpu.core_type<tc>, window_params = [{transform_indices = @transform_0, window_bounds = array<i64: 2, 8, 32>}, {transform_indices = @transform_1, window_bounds = array<i64: 2, 8>}, {transform_indices = @transform_2, window_bounds = array<i64: 2, 32>}]} {
    %c0 = arith.constant 0 : index
    %c0_0 = arith.constant 0 : index
    %c0_1 = arith.constant 0 : index
    %0 = vector.load %arg3[%c0, %c0_0, %c0_1] : memref<2x8x32xf32, #tpu.memory_space<vmem>>, vector<2x8x32xf32>
    %c0_2 = arith.constant 0 : index
    %c0_3 = arith.constant 0 : index
    %1 = vector.load %arg4[%c0_2, %c0_3] : memref<2x8xf32, #tpu.memory_space<vmem>>, vector<2x8xf32>
    %2 = vector.shape_cast %1 : vector<2x8xf32> to vector<2x8x1xf32>
    %3 = vector.broadcast %2 : vector<2x8x1xf32> to vector<2x8x32xf32>
    %4 = arith.mulf %0, %3 : vector<2x8x32xf32>
    %c0_i32 = arith.constant 0 : i32
    %5 = arith.cmpi eq, %arg2, %c0_i32 : i32
    %6 = arith.extui %5 : i1 to i32
    %c0_i32_4 = arith.constant 0 : i32
    %7 = arith.cmpi ne, %6, %c0_i32_4 : i32
    scf.if %7 {
      %cst_9 = arith.constant 0.000000e+00 : f32
      %12 = vector.broadcast %cst_9 : f32 to vector<2x32xf32>
      %c0_10 = arith.constant 0 : index
      %c0_11 = arith.constant 0 : index
      %13 = vector.load %arg5[%c0_10, %c0_11] : memref<2x32xf32, #tpu.memory_space<vmem>>, vector<2x32xf32>
      tpu.vector_store %arg5[%c0_10, %c0_11], %12 {strides = array<i32>} : memref<2x32xf32, #tpu.memory_space<vmem>>, vector<2x32xf32>,
    } else {
    }
    %c0_5 = arith.constant 0 : index
    %c0_6 = arith.constant 0 : index
    %8 = vector.load %arg5[%c0_5, %c0_6] : memref<2x32xf32, #tpu.memory_space<vmem>>, vector<2x32xf32>
    %cst = arith.constant dense<0.000000e+00> : vector<2x32xf32>
    %9 = vector.multi_reduction <add>, %4, %cst [1] : vector<2x8x32xf32> to vector<2x32xf32>
    %10 = arith.addf %8, %9 : vector<2x32xf32>
    %c0_7 = arith.constant 0 : index
    %c0_8 = arith.constant 0 : index
    %11 = vector.load %arg5[%c0_7, %c0_8] : memref<2x32xf32, #tpu.memory_space<vmem>>, vector<2x32xf32>
    tpu.vector_store %arg5[%c0_7, %c0_8], %10 {strides = array<i32>} : memref<2x32xf32, #tpu.memory_space<vmem>>, vector<2x32xf32>,
    return
  }
  func.func @transform_0(%arg0: i32, %arg1: i32, %arg2: i32) -> (i32, i32, i32) {
    %c0_i32 = arith.constant 0 : i32
    return %arg0, %arg2, %arg1 : i32, i32, i32
  }
  func.func @transform_1(%arg0: i32, %arg1: i32, %arg2: i32) -> (i32, i32) {
    %c0_i32 = arith.constant 0 : i32
    return %arg0, %arg2 : i32, i32
  }
  func.func @transform_2(%arg0: i32, %arg1: i32, %arg2: i32) -> (i32, i32) {
    %c0_i32 = arith.constant 0 : i32
    return %arg0, %arg1 : i32, i32
  }
}

</mosaic_0001>

<llo_original>
// kernel: tpu_custom_call.1
$region0: #{tpu_custom_call.1}
  #allocation0 [shape = 'u32[]', space=smem, size = 0x4, offset = 0x4, fixed_abs, tag = 'smem constant byte address 0x4 - core index']
  #allocation1 [shape = 'u32[144,128]{1,0:T(1,128)}', space=vmem, size = 0x12000, scoped, tag = 'internal scratch']
  %s0 = inlined_call_operand.hbm [shape: f32[2,8,32], index: 0, kind: input, shape index: {}]
  %s1 = inlined_call_operand.vmem [shape: f32[2,8], index: 1, kind: input, shape index: {}]
  %s2 = inlined_call_operand.hbm [shape: f32[2,32], index: 2, kind: output, shape index: {}]
  %s3 = sld [smem:[#allocation0]]
  $region26: #{tpu_custom_call.1} parent=0
    _
  %s5 = ssub.s32 1, %s3
  %s6 = scalar_select 0, %s5, %s3
  $region1: #{tpu_custom_call.1} parent=0
    #allocation2 [shape = 'u8[8192]{0}', space=vmem, size = 0x2000, scoped, tag = 'input window, operand 0, single buffered']
    #allocation3 [shape = 's32[1]{0}', space=sflag, size = 0x4, scoped, tag = 'scoped memory for tpu_custom_call.1']
    #allocation4 [shape = 's32[1]{0}', space=sflag, size = 0x4, scoped, tag = 'scoped memory for tpu_custom_call.1']
    #allocation5 [shape = 'u8[1024]{0}', space=vmem, size = 0x400, scoped, tag = 'output window, operand 0, single buffered']
    %7 = vsyncpa [#allocation3], 0
    %8 = vsyncpa [#allocation4], 0
    // Predicated region
    $region2: #{tpu_custom_call.1} parent=1 // pred_check
      _
    $region3: #{tpu_custom_call.1} parent=1 // pred_check_branch
      %10 = sbr.rel (0) target = $region5
    $region4: #{tpu_custom_call.1} parent=1 // pred_region
      %s12 = ssub.s32 256, 256
      %13 = vsyncadd [#allocation3], %s12
      %s14 = sshll.u32 [#allocation2], 4
      %s15 = int_to_ptr.vmem [resolvable:$true] %s14
      %20 = dma.hbm_to_vmem [thread:$0]  %s0, 256, %s15, [#allocation3], 128, 128, 8
    $region5: #{tpu_custom_call.1} parent=1 // pred_fallthru
      _
    // Predicated region
    $region6: #{tpu_custom_call.1} parent=1 // pred_check
      _
    $region7: #{tpu_custom_call.1} parent=1 // pred_check_branch
      %22 = sbr.rel (0) target = $region9
    $region8: #{tpu_custom_call.1} parent=1 // pred_region
      _
    $region9: #{tpu_custom_call.1} parent=1 // pred_fallthru
      _
    // Predicated region
    $region10: #{tpu_custom_call.1} parent=1 // pred_check
      _
    $region11: #{tpu_custom_call.1} parent=1 // pred_check_branch
      %24 = sbr.rel (0) target = $region13
    $region12: #{tpu_custom_call.1} parent=1 // pred_region
      %25 = dma.done [#allocation3], 256
    $region13: #{tpu_custom_call.1} parent=1 // pred_fallthru
      _
    %v26 = vld [vmem:[#allocation2] sm:$0xff]
    %v27 = vld [vmem:[#allocation2 + $0x8] sm:$0xff]
    %v28 = vld [vmem:[%s1] sm:$0x3]
    %v29 = vlaneseq
    %v30 = vshrl.u32 %v29, 7
    %v31 = vsub.s32 0, %v30
    %v32 = vrot.slane %v28, %v31
    %34 = vbcast.lane.b32.xlu0 %v32, 256
    %v35 = vpop.permute.xlu0 %34
    %v36 = vlaneseq
    %v37 = vshrl.u32 %v36, 7
    %v38 = vsub.s32 1, %v37
    %v39 = vrot.slane %v28, %v38
    %41 = vbcast.lane.b32.xlu0 %v39, 256
    %v42 = vpop.permute.xlu0 %41
    %v43 = vmul.f32 %v26, %v35
    %v44 = vmul.f32 %v27, %v42
    %p45 = scmp.eq.s32.totalorder 0, 0
    // Predicated region
    $region14: #{tpu_custom_call.1} parent=1 // pred_check
      %p46 = pneg %p45
    $region15: #{tpu_custom_call.1} parent=1 // pred_check_branch
      %48 = sbr.rel (%p46) target = $region17
    $region16: #{tpu_custom_call.1} parent=1 // pred_region
      %vm49 = vcmask 254976
      %50 = vst.msk [vmem:[#allocation5] sm:$0x3] %vm49, 0.0
    $region17: #{tpu_custom_call.1} parent=1 // pred_fallthru
      _
    %v51 = vld [vmem:[#allocation5] sm:$0x3]
    %vm52 = vcmask 261120
    %v53 = vsel %vm52, %v43, 0.0
    %v54 = vrot.slane %v53, 4
    %v55 = vadd.f32 %v53, %v54
    %v56 = vrot.slane %v55, 2
    %v57 = vadd.f32 %v55, %v56
    %v58 = vrot.slane %v57, 1
    %v59 = vadd.f32 %v57, %v58
    %v60 = vsel %vm52, %v44, 0.0
    %v61 = vrot.slane %v60, 4
    %v62 = vadd.f32 %v60, %v61
    %v63 = vrot.slane %v62, 2
    %v64 = vadd.f32 %v62, %v63
    %v65 = vrot.slane %v64, 1
    %v66 = vadd.f32 %v64, %v65
    %vm69 = vcmask 1041409
    %v70 = vsel %vm69, %v66, %v59
    %v72 = vadd.f32 %v51, %v70
    %vm73 = vcmask 254976
    %74 = vst.msk [vmem:[#allocation5] sm:$0x3] %vm73, %v72
    // Predicated region
    $region18: #{tpu_custom_call.1} parent=1 // pred_check
      _
    $region19: #{tpu_custom_call.1} parent=1 // pred_check_branch
      %76 = sbr.rel (0) target = $region21
    $region20: #{tpu_custom_call.1} parent=1 // pred_region
      %s78 = ssub.s32 32, 32
      %79 = vsyncadd [#allocation4], %s78
      %s81 = sshll.u32 [#allocation5], 4
      %s82 = int_to_ptr.vmem [resolvable:$true] %s81
      %84 = dma.vmem_to_hbm [thread:$0]  %s82, 32, %s2, [#allocation4]
    $region21: #{tpu_custom_call.1} parent=1 // pred_fallthru
      _
    // Predicated region
    $region22: #{tpu_custom_call.1} parent=1 // pred_check
      _
    $region23: #{tpu_custom_call.1} parent=1 // pred_check_branch
      %86 = sbr.rel (0) target = $region25
    $region24: #{tpu_custom_call.1} parent=1 // pred_region
      %87 = dma.done [#allocation4], 32
    $region25: #{tpu_custom_call.1} parent=1 // pred_fallthru
      _
    %88 = vsyncpa [#allocation3], 1
    %89 = vsyncpa [#allocation4], 1

</llo_original>
